<compile_context>
chip_gen: v6e
topology: v6e:2x2x1
jax: 0.10.0
libtpu: 0.0.40
codegen_flags: <defaults>
</compile_context>

<pallas_src>
import functools

import jax
import jax.numpy as jnp
from jax.experimental import pallas as pl
from jax.experimental.pallas import tpu as pltpu


def _round_up(n, m):
    return ((n + m - 1) // m) * m


def _nbytes(shape, dtype):
    n = 1
    for s in shape:
        n *= int(s)
    return n * jnp.dtype(dtype).itemsize


# torch.nn.LSTMCell gate order along the 4H axis: [i, f, g, o]
_TORCH_I, _TORCH_F, _TORCH_G, _TORCH_O = 0, 1, 2, 3
# packed kernel gate layouts (column order of the packed gate axis)
_ORDER_ZERO_STATE = (_TORCH_I, _TORCH_O, _TORCH_G)       # [i | o | g]   (f dead: c0 == 0)
_ORDER_FULL = (_TORCH_I, _TORCH_F, _TORCH_O, _TORCH_G)   # [i | f | o | g]


def _lstm_kernel(n_layers, hp, state_is_zero, *refs):
    """One grid step == one LSTM layer. Activation carried across layers in VMEM."""
    if state_is_zero:
        (x_ref, wih_ref, b_ref, wo_ref, bo_ref, out_ref, a_scr) = refs
        whh_ref = h0_ref = c0_ref = None
    else:
        (x_ref, wih_ref, whh_ref, b_ref, h0_ref, c0_ref,
         wo_ref, bo_ref, out_ref, a_scr) = refs

    l = pl.program_id(0)

    # Layer-0 gate input is the (embed-folded) network input.
    @pl.when(l == 0)
    def _():
        a_scr[...] = x_ref[...]

    gates = (jnp.dot(a_scr[...].astype(jnp.bfloat16), wih_ref[0],
                     preferred_element_type=jnp.float32)
             + b_ref[0])
    if not state_is_zero:
        gates = gates + jnp.dot(h0_ref[0].astype(jnp.bfloat16), whh_ref[0],
                                preferred_element_type=jnp.float32)

    if state_is_zero:
        # packed layout [i | o | g]: one wide sigmoid over 2*Hp lanes, one tanh.
        sig = jax.nn.sigmoid(gates[:, : 2 * hp])
        i_g = sig[:, 0 * hp:1 * hp]
        o_g = sig[:, 1 * hp:2 * hp]
        g_g = jnp.tanh(gates[:, 2 * hp:])
        c_new = i_g * g_g                      # f_g * c0 == 0 by construction
    else:
        # packed layout [i | f | o | g]: one wide sigmoid over 3*Hp lanes.
        sig = jax.nn.sigmoid(gates[:, : 3 * hp])
        i_g = sig[:, 0 * hp:1 * hp]
        f_g = sig[:, 1 * hp:2 * hp]
        o_g = sig[:, 2 * hp:3 * hp]
        g_g = jnp.tanh(gates[:, 3 * hp:])
        c_new = f_g * c0_ref[0].astype(jnp.float32) + i_g * g_g

    h_new = o_g * jnp.tanh(c_new)
    # Columns >= hp of a_scr multiply zero-padded weight rows in later layers,
    # so only the first hp lanes need updating.
    a_scr[:, :hp] = h_new

    # output = nn.Sequential(nn.Linear(hidden_size, output_size), nn.Tanh())
    @pl.when(l == n_layers - 1)
    def _():
        y = (jnp.dot(h_new.astype(jnp.bfloat16), wo_ref[...],
                     preferred_element_type=jnp.float32)
             + bo_ref[...])
        out_ref[...] = jnp.tanh(y)


# --------------------------------------------------------------------------
# Host-side parameter packing: fold embed into layer 0, pad to (8,128) tiles,
# reorder gates, cast bf16.
# --------------------------------------------------------------------------
def _pack_gates(w, order, H, Hp, row_pad, dtype):
    """w: (rows, 4H) in torch [i,f,g,o] order -> (row_pad, len(order)*Hp) padded slab."""
    rows = w.shape[0]
    out = jnp.zeros((row_pad, len(order) * Hp), dtype)
    for k, g in enumerate(order):
        out = out.at[:rows, k * Hp:k * Hp + H].set(w[:, g * H:(g + 1) * H].astype(dtype))
    return out


def pack_params(p, *, input_size, output_size, hidden_size, n_layers,
                batch_size, state_is_zero=True, weight_dtype=jnp.bfloat16):
    H = hidden_size
    Bp = _round_up(batch_size, 8)
    Hp = _round_up(H, 128)
    Kp = max(_round_up(input_size, 128), Hp)   # common contraction dim for the gate matmul
    Op = _round_up(output_size, 128)
    order = _ORDER_ZERO_STATE if state_is_zero else _ORDER_FULL
    ng = len(order)

    # Fold embed Linear into layer 0 (exact, f32 math):
    #   gates_0 = (x@We + be)@Wih_0 + b_0 = x@(We@Wih_0) + (be@Wih_0 + b_0)
    wih_eff = [jnp.dot(p["we"], p["wih"][0])] + [p["wih"][l] for l in range(1, n_layers)]
    b_eff = [jnp.dot(p["be"], p["wih"][0]) + p["b"][0]] + [p["b"][l] for l in range(1, n_layers)]

    wih = jnp.stack([_pack_gates(wih_eff[l], order, H, Hp, Kp, weight_dtype)
                     for l in range(n_layers)])
    b = jnp.stack([_pack_gates(b_eff[l], order, H, Hp, 1, jnp.float32)
                   for l in range(n_layers)])

    wo = jnp.zeros((Hp, Op), weight_dtype).at[:H, :output_size].set(
        p["wo"].astype(weight_dtype))
    bo = jnp.zeros((1, Op), jnp.float32).at[:, :output_size].set(p["bo"])

    packed = dict(wih=wih, b=b, wo=wo, bo=bo,
                  dims=dict(Bp=Bp, Kp=Kp, Hp=Hp, Op=Op, ng=ng,
                            batch=batch_size, input_size=input_size,
                            output_size=output_size, hidden_size=H,
                            n_layers=n_layers, state_is_zero=state_is_zero))
    if not state_is_zero:
        whh = jnp.stack([_pack_gates(p["whh"][l], order, H, Hp, Hp, weight_dtype)
                         for l in range(n_layers)])
        h0 = jnp.zeros((n_layers, Bp, Hp), jnp.float32).at[:, :batch_size, :H].set(p["h0"])
        c0 = jnp.zeros((n_layers, Bp, Hp), jnp.float32).at[:, :batch_size, :H].set(p["c0"])
        packed.update(whh=whh, h0=h0, c0=c0)
    return packed


def lstm_forward(x, packed):
    """x: (batch, input_size) f32.  Returns (batch, output_size) f32."""
    d = packed["dims"]
    Bp, Kp, Hp, Op, ng = d["Bp"], d["Kp"], d["Hp"], d["Op"], d["ng"]
    n_layers = d["n_layers"]
    state_is_zero = d["state_is_zero"]
    batch, input_size, output_size = d["batch"], d["input_size"], d["output_size"]

    # pad input to a zero-filled (8,128)-aligned slab (exact: padded rows/cols are 0)
    xp = jnp.zeros((Bp, Kp), jnp.float32).at[:batch, :input_size].set(
        x.astype(jnp.float32))

    if state_is_zero:
        in_specs = [
            pl.BlockSpec((Bp, Kp), lambda l: (0, 0)),              # x (embed folded)
            pl.BlockSpec((1, Kp, ng * Hp), lambda l: (l, 0, 0)),   # wih (per layer)
            pl.BlockSpec((1, 1, ng * Hp), lambda l: (l, 0, 0)),    # bias (per layer)
            pl.BlockSpec((Hp, Op), lambda l: (0, 0)),              # wo
            pl.BlockSpec((1, Op), lambda l: (0, 0)),               # bo
        ]
        args = [xp, packed["wih"], packed["b"], packed["wo"], packed["bo"]]
    else:
        in_specs = [
            pl.BlockSpec((Bp, Kp), lambda l: (0, 0)),              # x (embed folded)
            pl.BlockSpec((1, Kp, ng * Hp), lambda l: (l, 0, 0)),   # wih
            pl.BlockSpec((1, Hp, ng * Hp), lambda l: (l, 0, 0)),   # whh
            pl.BlockSpec((1, 1, ng * Hp), lambda l: (l, 0, 0)),    # bias
            pl.BlockSpec((1, Bp, Hp), lambda l: (l, 0, 0)),        # h0
            pl.BlockSpec((1, Bp, Hp), lambda l: (l, 0, 0)),        # c0
            pl.BlockSpec((Hp, Op), lambda l: (0, 0)),              # wo
            pl.BlockSpec((1, Op), lambda l: (0, 0)),               # bo
        ]
        args = [xp, packed["wih"], packed["whh"], packed["b"],
                packed["h0"], packed["c0"], packed["wo"], packed["bo"]]

    # VMEM budget: per-step resident blocks (x2 for double buffering) + headroom.
    blk_bytes = 0
    for a in args:
        shp = a.shape[1:] if a.ndim == 3 else a.shape
        blk_bytes += _nbytes(shp, a.dtype)
    blk_bytes += _nbytes((Bp, Op), jnp.float32) + _nbytes((Bp, Kp), jnp.float32)
    vmem_limit = int(min(max(4 * blk_bytes + (2 << 20), 8 << 20), 64 << 20))

    kernel = functools.partial(_lstm_kernel, n_layers, Hp, state_is_zero)
    out_p = pl.pallas_call(
        kernel,
        out_shape=jax.ShapeDtypeStruct((Bp, Op), jnp.float32),
        grid_spec=pltpu.PrefetchScalarGridSpec(
            num_scalar_prefetch=0,
            grid=(n_layers,),
            in_specs=in_specs,
            out_specs=pl.BlockSpec((Bp, Op), lambda l: (0, 0)),
            scratch_shapes=[pltpu.VMEM((Bp, Kp), jnp.float32)],
        ),
        compiler_params=pltpu.CompilerParams(
            dimension_semantics=("arbitrary",),
            vmem_limit_bytes=vmem_limit,
        ),
    )(*args)
    return out_p[:batch, :output_size]


# --------------------------------------------------------------------------
# Reference-layout parameters + pure-JAX reference (mirrors the PyTorch module)
# --------------------------------------------------------------------------
def init_params(key, *, input_size, output_size, hidden_size, n_layers, batch_size):
    ks = jax.random.split(key, 8)
    scale = 0.1
    we = scale * jax.random.normal(ks[0], (input_size, hidden_size), jnp.float32)
    be = scale * jax.random.normal(ks[1], (1, hidden_size), jnp.float32)
    wih = scale * jax.random.normal(ks[2], (n_layers, hidden_size, 4 * hidden_size), jnp.float32)
    whh = scale * jax.random.normal(ks[3], (n_layers, hidden_size, 4 * hidden_size), jnp.float32)
    b = scale * jax.random.normal(ks[4], (n_layers, 1, 4 * hidden_size), jnp.float32)
    wo = scale * jax.random.normal(ks[5], (hidden_size, output_size), jnp.float32)
    bo = scale * jax.random.normal(ks[6], (1, output_size), jnp.float32)
    # init_hidden(): zeros (batch, hidden) per layer for both h and c
    h0 = jnp.zeros((n_layers, batch_size, hidden_size), jnp.float32)
    c0 = jnp.zeros((n_layers, batch_size, hidden_size), jnp.float32)
    return dict(we=we, be=be, wih=wih, whh=whh, b=b, wo=wo, bo=bo, h0=h0, c0=c0)


def reference_forward(x, p, *, n_layers, hidden_size):
    H = hidden_size
    h_in = x @ p["we"] + p["be"]
    for l in range(n_layers):
        h, c = p["h0"][l], p["c0"][l]
        gates = h_in @ p["wih"][l] + h @ p["whh"][l] + p["b"][l]
        i_g = jax.nn.sigmoid(gates[:, 0 * H:1 * H])
        f_g = jax.nn.sigmoid(gates[:, 1 * H:2 * H])
        g_g = jnp.tanh(gates[:, 2 * H:3 * H])
        o_g = jax.nn.sigmoid(gates[:, 3 * H:4 * H])
        c_new = f_g * c + i_g * g_g
        h_in = o_g * jnp.tanh(c_new)
    return jnp.tanh(h_in @ p["wo"] + p["bo"])


if __name__ == "__main__":
    input_size, output_size, hidden_size = 8, 4, 32
    n_layers, batch_size = 2, 2

    key = jax.random.PRNGKey(0)
    k_param, k_x = jax.random.split(key)
    params = init_params(k_param, input_size=input_size, output_size=output_size,
                         hidden_size=hidden_size, n_layers=n_layers,
                         batch_size=batch_size)

    # forward does input.view(-1, input_size) -> feed (batch, input_size) directly.
    x = jax.random.normal(k_x, (batch_size, input_size), jnp.float32)

    ref = reference_forward(x, params, n_layers=n_layers, hidden_size=hidden_size)

    # Optimized path: zero initial state (matches init_hidden()), whh/f-gate dropped.
    packed = pack_params(params, input_size=input_size, output_size=output_size,
                         hidden_size=hidden_size, n_layers=n_layers,
                         batch_size=batch_size, state_is_zero=True)
    out = jax.block_until_ready(lstm_forward(x, packed))
    assert out.shape == (batch_size, output_size)
    err = float(jnp.max(jnp.abs(out - ref)))
    assert err < 1e-2, f"zero-state path max abs err {err}"

    # Guarded general path (explicit h0/c0 + whh) must also match.
    packed_full = pack_params(params, input_size=input_size, output_size=output_size,
                              hidden_size=hidden_size, n_layers=n_layers,
                              batch_size=batch_size, state_is_zero=False)
    out_full = jax.block_until_ready(lstm_forward(x, packed_full))
    err_full = float(jnp.max(jnp.abs(out_full - ref)))
    assert err_full < 1e-2, f"full-state path max abs err {err_full}"

    print("KERNEL_OK")
</pallas_src>

<mosaic_0001>
module attributes {stable_mosaic.version = 11 : i64} {
  func.func @_lstm_kernel(%arg0: i32, %arg1: memref<8x128xf32, #tpu.memory_space<vmem>>, %arg2: memref<1x128x384xbf16, #tpu.memory_space<vmem>>, %arg3: memref<1x1x384xf32, #tpu.memory_space<vmem>>, %arg4: memref<128x128xbf16, #tpu.memory_space<vmem>>, %arg5: memref<1x128xf32, #tpu.memory_space<vmem>>, %arg6: memref<8x128xf32, #tpu.memory_space<vmem>>, %arg7: memref<8x128xf32, #tpu.memory_space<vmem>>) attributes {dimension_semantics = [#tpu.dimension_semantics<arbitrary>], iteration_bounds = array<i64: 2>, scalar_prefetch = 0 : i64, scratch_operands = 1 : i64, tpu.core_type = #tpu.core_type<tc>, window_params = [{pipeline_mode = #tpu.pipeline_mode<synchronous>, transform_indices = @transform_0, window_bounds = array<i64: 8, 128>}, {transform_indices = @transform_1, window_bounds = array<i64: 1, 128, 384>}, {transform_indices = @transform_2, window_bounds = array<i64: 1, 1, 384>}, {pipeline_mode = #tpu.pipeline_mode<synchronous>, transform_indices = @transform_3, window_bounds = array<i64: 128, 128>}, {pipeline_mode = #tpu.pipeline_mode<synchronous>, transform_indices = @transform_4, window_bounds = array<i64: 1, 128>}, {pipeline_mode = #tpu.pipeline_mode<synchronous>, transform_indices = @transform_5, window_bounds = array<i64: 8, 128>}]} {
    %c0_i32 = arith.constant 0 : i32
    %0 = arith.cmpi eq, %arg0, %c0_i32 : i32
    %1 = arith.extui %0 : i1 to i32
    %c0_i32_0 = arith.constant 0 : i32
    %2 = arith.cmpi ne, %1, %c0_i32_0 : i32
    scf.if %2 {
      %c0_12 = arith.constant 0 : index
      %c0_13 = arith.constant 0 : index
      %29 = vector.load %arg1[%c0_12, %c0_13] : memref<8x128xf32, #tpu.memory_space<vmem>>, vector<8x128xf32>
      %c0_14 = arith.constant 0 : index
      %c0_15 = arith.constant 0 : index
      %30 = vector.load %arg7[%c0_14, %c0_15] : memref<8x128xf32, #tpu.memory_space<vmem>>, vector<8x128xf32>
      tpu.vector_store %arg7[%c0_14, %c0_15], %29 {strides = array<i32>} : memref<8x128xf32, #tpu.memory_space<vmem>>, vector<8x128xf32>,
    } else {
    }
    %c0 = arith.constant 0 : index
    %c0_1 = arith.constant 0 : index
    %3 = vector.load %arg7[%c0, %c0_1] : memref<8x128xf32, #tpu.memory_space<vmem>>, vector<8x128xf32>
    %4 = arith.truncf %3 : vector<8x128xf32> to vector<8x128xbf16>
    %c0_2 = arith.constant 0 : index
    %c0_3 = arith.constant 0 : index
    %c0_4 = arith.constant 0 : index
    %5 = vector.load %arg2[%c0_2, %c0_3, %c0_4] : memref<1x128x384xbf16, #tpu.memory_space<vmem>>, vector<1x128x384xbf16>
    %6 = vector.shape_cast %5 : vector<1x128x384xbf16> to vector<128x384xbf16>
    %cst = arith.constant dense<0.000000e+00> : vector<8x384xf32>
    %7 = tpu.matmul %4, %6, %cst {dimension_numbers = #tpu.dot_dimension_numbers<[1], [0], [0], [1], [0, 0, 1, 1], [], []>} : vector<8x128xbf16>, vector<128x384xbf16>, vector<8x384xf32> -> vector<8x384xf32>
    %c0_5 = arith.constant 0 : index
    %c0_6 = arith.constant 0 : index
    %c0_7 = arith.constant 0 : index
    %8 = vector.load %arg3[%c0_5, %c0_6, %c0_7] : memref<1x1x384xf32, #tpu.memory_space<vmem>>, vector<1x1x384xf32>
    %9 = vector.shape_cast %8 : vector<1x1x384xf32> to vector<1x384xf32>
    %10 = vector.broadcast %9 : vector<1x384xf32> to vector<8x384xf32>
    %11 = arith.addf %7, %10 : vector<8x384xf32>
    %12 = vector.extract_strided_slice %11 {offsets = [0, 0], sizes = [8, 256], strides = [1, 1]} : vector<8x384xf32> to vector<8x256xf32>
    %13 = arith.negf %12 : vector<8x256xf32>
    %14 = math.exp %13 : vector<8x256xf32>
    %cst_8 = arith.constant 1.000000e+00 : f32
    %15 = vector.broadcast %cst_8 : f32 to vector<8x256xf32>
    %16 = arith.addf %15, %14 : vector<8x256xf32>
    %17 = arith.divf %15, %16 : vector<8x256xf32>
    %18 = vector.extract_strided_slice %17 {offsets = [0, 0], sizes = [8, 128], strides = [1, 1]} : vector<8x256xf32> to vector<8x128xf32>
    %19 = vector.extract_strided_slice %17 {offsets = [0, 128], sizes = [8, 128], strides = [1, 1]} : vector<8x256xf32> to vector<8x128xf32>
    %20 = vector.extract_strided_slice %11 {offsets = [0, 256], sizes = [8, 128], strides = [1, 1]} : vector<8x384xf32> to vector<8x128xf32>
    %21 = math.tanh %20 : vector<8x128xf32>
    %22 = arith.mulf %18, %21 : vector<8x128xf32>
    %23 = math.tanh %22 : vector<8x128xf32>
    %24 = arith.mulf %19, %23 : vector<8x128xf32>
    %c0_9 = arith.constant 0 : index
    %c0_10 = arith.constant 0 : index
    %25 = vector.load %arg7[%c0_9, %c0_10] : memref<8x128xf32, #tpu.memory_space<vmem>>, vector<8x128xf32>
    tpu.vector_store %arg7[%c0_9, %c0_10], %24 {strides = array<i32>} : memref<8x128xf32, #tpu.memory_space<vmem>>, vector<8x128xf32>,
    %c1_i32 = arith.constant 1 : i32
    %26 = arith.cmpi eq, %arg0, %c1_i32 : i32
    %27 = arith.extui %26 : i1 to i32
    %c0_i32_11 = arith.constant 0 : i32
    %28 = arith.cmpi ne, %27, %c0_i32_11 : i32
    scf.if %28 {
      %29 = arith.truncf %24 : vector<8x128xf32> to vector<8x128xbf16>
      %c0_12 = arith.constant 0 : index
      %c0_13 = arith.constant 0 : index
      %30 = vector.load %arg4[%c0_12, %c0_13] : memref<128x128xbf16, #tpu.memory_space<vmem>>, vector<128x128xbf16>
      %cst_14 = arith.constant dense<0.000000e+00> : vector<8x128xf32>
      %31 = tpu.matmul %29, %30, %cst_14 {dimension_numbers = #tpu.dot_dimension_numbers<[1], [0], [0], [1], [0, 0, 1, 1], [], []>} : vector<8x128xbf16>, vector<128x128xbf16>, vector<8x128xf32> -> vector<8x128xf32>
      %c0_15 = arith.constant 0 : index
      %c0_16 = arith.constant 0 : index
      %32 = vector.load %arg5[%c0_15, %c0_16] : memref<1x128xf32, #tpu.memory_space<vmem>>, vector<1x128xf32>
      %33 = vector.broadcast %32 : vector<1x128xf32> to vector<8x128xf32>
      %34 = arith.addf %31, %33 : vector<8x128xf32>
      %35 = math.tanh %34 : vector<8x128xf32>
      %c0_17 = arith.constant 0 : index
      %c0_18 = arith.constant 0 : index
      %36 = vector.load %arg6[%c0_17, %c0_18] : memref<8x128xf32, #tpu.memory_space<vmem>>, vector<8x128xf32>
      tpu.vector_store %arg6[%c0_17, %c0_18], %35 {strides = array<i32>} : memref<8x128xf32, #tpu.memory_space<vmem>>, vector<8x128xf32>,
    } else {
    }
    return
  }
  func.func @transform_0(%arg0: i32) -> (i32, i32) {
    %c0_i32 = arith.constant 0 : i32
    %c0_i32_0 = arith.constant 0 : i32
    %c0_i32_1 = arith.constant 0 : i32
    return %c0_i32, %c0_i32_0 : i32, i32
  }
  func.func @transform_1(%arg0: i32) -> (i32, i32, i32) {
    %c0_i32 = arith.constant 0 : i32
    %c0_i32_0 = arith.constant 0 : i32
    %c0_i32_1 = arith.constant 0 : i32
    return %arg0, %c0_i32, %c0_i32_0 : i32, i32, i32
  }
  func.func @transform_2(%arg0: i32) -> (i32, i32, i32) {
    %c0_i32 = arith.constant 0 : i32
    %c0_i32_0 = arith.constant 0 : i32
    %c0_i32_1 = arith.constant 0 : i32
    return %arg0, %c0_i32, %c0_i32_0 : i32, i32, i32
  }
  func.func @transform_3(%arg0: i32) -> (i32, i32) {
    %c0_i32 = arith.constant 0 : i32
    %c0_i32_0 = arith.constant 0 : i32
    %c0_i32_1 = arith.constant 0 : i32
    return %c0_i32, %c0_i32_0 : i32, i32
  }
  func.func @transform_4(%arg0: i32) -> (i32, i32) {
    %c0_i32 = arith.constant 0 : i32
    %c0_i32_0 = arith.constant 0 : i32
    %c0_i32_1 = arith.constant 0 : i32
    return %c0_i32, %c0_i32_0 : i32, i32
  }
  func.func @transform_5(%arg0: i32) -> (i32, i32) {
    %c0_i32 = arith.constant 0 : i32
    %c0_i32_0 = arith.constant 0 : i32
    %c0_i32_1 = arith.constant 0 : i32
    return %c0_i32, %c0_i32_0 : i32, i32
  }
}

</mosaic_0001>

<llo_original>
// kernel: tpu_custom_call.1
$region0: #{tpu_custom_call.1}
  #allocation0 [shape = 'u32[]', space=smem, size = 0x4, offset = 0x4, fixed_abs, tag = 'smem constant byte address 0x4 - core index']
  #allocation1 [shape = 'u32[144,128]{1,0:T(1,128)}', space=vmem, size = 0x12000, scoped, tag = 'internal scratch']
  #allocation2 [shape = 'f32[8,128]{1,0:T(8,128)}', space=vmem, size = 0x1000, scoped, tag = 'scratch operand']
  %s0 = inlined_call_operand.hbm [shape: f32[8,128], index: 0, kind: input, shape index: {}]
  %s1 = inlined_call_operand.hbm [shape: bf16[2,128,384], index: 1, kind: input, shape index: {}]
  %s2 = inlined_call_operand.hbm [shape: f32[2,1,384], index: 2, kind: input, shape index: {}]
  %s3 = inlined_call_operand.hbm [shape: bf16[128,128], index: 3, kind: input, shape index: {}]
  %s4 = inlined_call_operand.vmem [shape: f32[1,128], index: 4, kind: input, shape index: {}]
  %s5 = inlined_call_operand.hbm [shape: f32[8,128], index: 5, kind: output, shape index: {}]
  %s6 = sld [smem:[#allocation0]]
  $region77: #{tpu_custom_call.1} parent=0
    _
  %s8 = ssub.s32 1, %s6
  %s9 = scalar_select 0, %s8, %s6
  $region1: #{tpu_custom_call.1} parent=0
    #allocation3 [shape = 'u8[4096]{0}', space=vmem, size = 0x1000, scoped, tag = 'input window, operand 0, single buffered']
    #allocation4 [shape = 's32[2]{0}', space=sflag, size = 0x8, scoped, tag = 'scoped memory for tpu_custom_call.1']
    #allocation5 [shape = 's32[2]{0}', space=sflag, size = 0x8, scoped, tag = 'scoped memory for tpu_custom_call.1']
    #allocation6 [shape = 'u8[196608]{0}', space=vmem, size = 0x30000, scoped, tag = 'input window, operand 1']
    #allocation7 [shape = 's32[2]{0}', space=sflag, size = 0x8, scoped, tag = 'scoped memory for tpu_custom_call.1']
    #allocation8 [shape = 'u8[3072]{0}', space=vmem, size = 0xc00, scoped, tag = 'input window, operand 2']
    #allocation9 [shape = 'u8[32768]{0}', space=vmem, size = 0x8000, scoped, tag = 'input window, operand 3, single buffered']
    #allocation10 [shape = 's32[1]{0}', space=sflag, size = 0x4, scoped, tag = 'scoped memory for tpu_custom_call.1']
    #allocation11 [shape = 'u8[4096]{0}', space=vmem, size = 0x1000, scoped, tag = 'output window, operand 0, single buffered']
    %10 = vsyncpa [#allocation4], 0
    %11 = vsyncpa [#allocation7], 0
    %s12 = scalar_lea.sflag [#allocation7], 1
    %13 = vsyncpa %s12, 0
    %14 = vsyncpa [#allocation10], 0
    %15 = vsyncpa [#allocation5], 0
    loop: start=0, step=1, limit=4
    $region2: #{tpu_custom_call.1} parent=1 // loop_pre_header
      _
    $region3: #{tpu_custom_call.1} parent=1 // loop_header
      %s17 = sphi 0, %s21
      %p18 = scmp.ge.s32.totalorder %s17, 4
      %s25 = sphi 0, %s25
      %s27 = sphi 0, %s25
      %s28 = sphi 0, %s27
      %s42 = sphi 0, %s28
      %s48 = sphi 0, %s50
      %s51 = sphi 0, %s48
      %s52 = sphi 0, %s51
      %s68 = sphi 0, %s52
      %s74 = sphi 0, %s76
      %s77 = sphi 0, %s74
      %s78 = sphi 0, %s77
      %s94 = sphi 0, %s78
      %s98 = sphi 0, %s98
      %s100 = sphi 0, %s98
      %s101 = sphi 0, %s100
      %s115 = sphi 0, %s101
      %s119 = sphi 0, %s119
      %s121 = sphi 0, %s119
      %s122 = sphi 0, %s121
      %s136 = sphi 0, %s122
      %s140 = sphi 0, %s140
      %s142 = sphi 0, %s140
      %s143 = sphi 0, %s142
      %s157 = sphi 0, %s143
    $region4: #{tpu_custom_call.1} parent=1 // loop_header_branch
      %20 = sbr.rel (%p18) target = $region8
    $region5: #{tpu_custom_call.1} parent=1 // loop_body
      %s22 = ssub.s32 %s17, 1
      %s23 = ssub.s32 %s17, 2
      %s24 = sadd.s32 %s17, 1
      %s26 = sadd.s32 %s25, 1
      %p29 = scmp.eq.s32.totalorder %s17, 1
      %p30 = scmp.ne.s32.totalorder %s25, %s27
      %p31 = scmp.eq.s32.totalorder %s17, 0
      %p32 = por %p30, %p31
      %p33 = scmp.ne.s32.totalorder %s25, %s27
      %p34 = scmp.eq.s32.totalorder %s22, 1
      %p35 = por %p33, %p34
      %p36 = scmp.ne.s32.totalorder %s27, %s28
      %p37 = scmp.eq.s32.totalorder %s22, 0
      %p38 = por %p36, %p37
      %p39 = scmp.ne.s32.totalorder %s27, %s28
      %p40 = scmp.eq.s32.totalorder %s23, 1
      %p41 = por %p39, %p40
      %p43 = scmp.ne.s32.totalorder %s28, %s42
      %p44 = scmp.eq.s32.totalorder %s23, 0
      %p45 = por %p43, %p44
      %s46 = ssub.s32 %s17, %s24
      %p47 = scmp.eq.s32.totalorder %s46, 0
      %s49 = sadd.s32 %s48, 1
      %s50 = scalar_select %p47, %s48, %s49
      %p53 = pneg %p47
      %p54 = scmp.eq.s32.totalorder %s17, 1
      %p55 = por %p53, %p54
      %p56 = scmp.ne.s32.totalorder %s48, %s51
      %p57 = scmp.eq.s32.totalorder %s17, 0
      %p58 = por %p56, %p57
      %p59 = scmp.ne.s32.totalorder %s48, %s51
      %p60 = scmp.eq.s32.totalorder %s22, 1
      %p61 = por %p59, %p60
      %p62 = scmp.ne.s32.totalorder %s51, %s52
      %p63 = scmp.eq.s32.totalorder %s22, 0
      %p64 = por %p62, %p63
      %p65 = scmp.ne.s32.totalorder %s51, %s52
      %p66 = scmp.eq.s32.totalorder %s23, 1
      %p67 = por %p65, %p66
      %p69 = scmp.ne.s32.totalorder %s52, %s68
      %p70 = scmp.eq.s32.totalorder %s23, 0
      %p71 = por %p69, %p70
      %s72 = ssub.s32 %s17, %s24
      %p73 = scmp.eq.s32.totalorder %s72, 0
      %s75 = sadd.s32 %s74, 1
      %s76 = scalar_select %p73, %s74, %s75
      %p79 = pneg %p73
      %p80 = scmp.eq.s32.totalorder %s17, 1
      %p81 = por %p79, %p80
      %p82 = scmp.ne.s32.totalorder %s74, %s77
      %p83 = scmp.eq.s32.totalorder %s17, 0
      %p84 = por %p82, %p83
      %p85 = scmp.ne.s32.totalorder %s74, %s77
      %p86 = scmp.eq.s32.totalorder %s22, 1
      %p87 = por %p85, %p86
      %p88 = scmp.ne.s32.totalorder %s77, %s78
      %p89 = scmp.eq.s32.totalorder %s22, 0
      %p90 = por %p88, %p89
      %p91 = scmp.ne.s32.totalorder %s77, %s78
      %p92 = scmp.eq.s32.totalorder %s23, 1
      %p93 = por %p91, %p92
      %p95 = scmp.ne.s32.totalorder %s78, %s94
      %p96 = scmp.eq.s32.totalorder %s23, 0
      %p97 = por %p95, %p96
      %s99 = sadd.s32 %s98, 1
      %p102 = scmp.eq.s32.totalorder %s17, 1
      %p103 = scmp.ne.s32.totalorder %s98, %s100
      %p104 = scmp.eq.s32.totalorder %s17, 0
      %p105 = por %p103, %p104
      %p106 = scmp.ne.s32.totalorder %s98, %s100
      %p107 = scmp.eq.s32.totalorder %s22, 1
      %p108 = por %p106, %p107
      %p109 = scmp.ne.s32.totalorder %s100, %s101
      %p110 = scmp.eq.s32.totalorder %s22, 0
      %p111 = por %p109, %p110
      %p112 = scmp.ne.s32.totalorder %s100, %s101
      %p113 = scmp.eq.s32.totalorder %s23, 1
      %p114 = por %p112, %p113
      %p116 = scmp.ne.s32.totalorder %s101, %s115
      %p117 = scmp.eq.s32.totalorder %s23, 0
      %p118 = por %p116, %p117
      %s120 = sadd.s32 %s119, 1
      %p123 = scmp.eq.s32.totalorder %s17, 1
      %p124 = scmp.ne.s32.totalorder %s119, %s121
      %p125 = scmp.eq.s32.totalorder %s17, 0
      %p126 = por %p124, %p125
      %p127 = scmp.ne.s32.totalorder %s119, %s121
      %p128 = scmp.eq.s32.totalorder %s22, 1
      %p129 = por %p127, %p128
      %p130 = scmp.ne.s32.totalorder %s121, %s122
      %p131 = scmp.eq.s32.totalorder %s22, 0
      %p132 = por %p130, %p131
      %p133 = scmp.ne.s32.totalorder %s121, %s122
      %p134 = scmp.eq.s32.totalorder %s23, 1
      %p135 = por %p133, %p134
      %p137 = scmp.ne.s32.totalorder %s122, %s136
      %p138 = scmp.eq.s32.totalorder %s23, 0
      %p139 = por %p137, %p138
      %s141 = sadd.s32 %s140, 1
      %p144 = scmp.eq.s32.totalorder %s17, 1
      %p145 = scmp.ne.s32.totalorder %s140, %s142
      %p146 = scmp.eq.s32.totalorder %s17, 0
      %p147 = por %p145, %p146
      %p148 = scmp.ne.s32.totalorder %s140, %s142
      %p149 = scmp.eq.s32.totalorder %s22, 1
      %p150 = por %p148, %p149
      %p151 = scmp.ne.s32.totalorder %s142, %s143
      %p152 = scmp.eq.s32.totalorder %s22, 0
      %p153 = por %p151, %p152
      %p154 = scmp.ne.s32.totalorder %s142, %s143
      %p155 = scmp.eq.s32.totalorder %s23, 1
      %p156 = por %p154, %p155
      %p158 = scmp.ne.s32.totalorder %s143, %s157
      %p159 = scmp.eq.s32.totalorder %s23, 0
      %p160 = por %p158, %p159
      %p161 = scmp.le.s32.totalorder 1, %s17
      %p162 = scmp.lt.s32.totalorder %s17, 3
      %p163 = pnand %p161, %p162
      %p164 = pneg %p163
      // Predicated region
      $region9: #{tpu_custom_call.1} parent=5 // pred_check
        _
      $region10: #{tpu_custom_call.1} parent=5 // pred_check_branch
        %166 = sbr.rel (%p163) target = $region12
      $region11: #{tpu_custom_call.1} parent=5 // pred_region
        %s167 = ssub.s32 %s17, 1
        // Predicated region
        $region13: #{tpu_custom_call.1} parent=11 // pred_check
          %p168 = pneg %p38
        $region14: #{tpu_custom_call.1} parent=11 // pred_check_branch
          %170 = sbr.rel (%p168) target = $region16
        $region15: #{tpu_custom_call.1} parent=11 // pred_region
          %s172 = ssub.s32 128, 128
          %173 = vsyncadd [#allocation4], %s172
          %s175 = sshll.u32 [#allocation3], 4
          %s176 = int_to_ptr.vmem [resolvable:$true] %s175
          %178 = dma.hbm_to_vmem [thread:$0]  %s0, 128, %s176, [#allocation4]
        $region16: #{tpu_custom_call.1} parent=11 // pred_fallthru
          _
        // Predicated region
        $region17: #{tpu_custom_call.1} parent=11 // pred_check
          %p179 = pneg %p111
        $region18: #{tpu_custom_call.1} parent=11 // pred_check_branch
          %181 = sbr.rel (%p179) target = $region20
        $region19: #{tpu_custom_call.1} parent=11 // pred_region
          %s183 = ssub.s32 1024, 1024
          %184 = vsyncadd [#allocation10], %s183
          %s185 = sshll.u32 [#allocation9], 4
          %s186 = int_to_ptr.vmem [resolvable:$true] %s185
          %191 = dma.hbm_to_vmem [thread:$0]  %s3, 1024, %s186, [#allocation10], 64, 64, 4
        $region20: #{tpu_custom_call.1} parent=11 // pred_fallthru
          _
        // Predicated region
        $region21: #{tpu_custom_call.1} parent=11 // pred_check
          %p192 = pneg %p132
        $region22: #{tpu_custom_call.1} parent=11 // pred_check_branch
          %194 = sbr.rel (%p192) target = $region24
        $region23: #{tpu_custom_call.1} parent=11 // pred_region
          _
        $region24: #{tpu_custom_call.1} parent=11 // pred_fallthru
          _
      $region12: #{tpu_custom_call.1} parent=5 // pred_fallthru
        _
      %p195 = scmp.lt.s32.totalorder %s17, 2
      // Predicated region
      $region25: #{tpu_custom_call.1} parent=5 // pred_check
        %p196 = pneg %p195
      $region26: #{tpu_custom_call.1} parent=5 // pred_check_branch
        %198 = sbr.rel (%p196) target = $region28
      $region27: #{tpu_custom_call.1} parent=5 // pred_region
        // Predicated region
        $region29: #{tpu_custom_call.1} parent=27 // pred_check
          %p199 = pneg %p58
        $region30: #{tpu_custom_call.1} parent=27 // pred_check_branch
          %201 = sbr.rel (%p199) target = $region32
        $region31: #{tpu_custom_call.1} parent=27 // pred_region
          %s202 = sand.u32 %s17, 1
          %s203 = scalar_lea.sflag [#allocation7], %s202
          %s204 = sand.u32 %s48, 1
          %s205 = smul.addr %s204, 192
          %s206 = scalar_lea.vmem [#allocation6], %s205
          %s208 = ssub.s32 3072, 3072
          %209 = vsyncadd %s203, %s208
          %s210 = smul.addr %s17, 48
          %s211 = smul.addr %s210, 64
          %s212 = scalar_lea.hbm %s1, %s211
          %s213 = sshll.u32 %s206, 4
          %s214 = int_to_ptr.vmem [resolvable:$true] %s213
          %219 = dma.hbm_to_vmem [thread:$0]  %s212, 3072, %s214, %s203, 192, 192, 12
        $region32: #{tpu_custom_call.1} parent=27 // pred_fallthru
          _
        // Predicated region
        $region33: #{tpu_custom_call.1} parent=27 // pred_check
          %p220 = pneg %p84
        $region34: #{tpu_custom_call.1} parent=27 // pred_check_branch
          %222 = sbr.rel (%p220) target = $region36
        $region35: #{tpu_custom_call.1} parent=27 // pred_region
          %s223 = sand.u32 %s17, 1
          %s224 = scalar_lea.sflag [#allocation7], %s223
          %s225 = sand.u32 %s74, 1
          %s226 = smul.addr %s225, 3
          %s227 = scalar_lea.vmem [#allocation8], %s226
          %s229 = ssub.s32 48, 48
          %230 = vsyncadd %s224, %s229
          %s231 = smul.addr %s17, 3
          %s232 = smul.addr %s231, 16
          %s233 = scalar_lea.hbm %s2, %s232
          %s235 = sshll.u32 %s227, 4
          %s236 = int_to_ptr.vmem [resolvable:$true] %s235
          %238 = dma.hbm_to_vmem [thread:$0]  %s233, 48, %s236, %s224
        $region36: #{tpu_custom_call.1} parent=27 // pred_fallthru
          _
      $region28: #{tpu_custom_call.1} parent=5 // pred_fallthru
        _
      %p239 = scmp.le.s32.totalorder 1, %s17
      %p240 = scmp.lt.s32.totalorder %s17, 3
      %p241 = pnand %p239, %p240
      %p242 = pneg %p241
      // Predicated region
      $region37: #{tpu_custom_call.1} parent=5 // pred_check
        _
      $region38: #{tpu_custom_call.1} parent=5 // pred_check_branch
        %244 = sbr.rel (%p241) target = $region40
      $region39: #{tpu_custom_call.1} parent=5 // pred_region
        %s245 = ssub.s32 %s17, 1
        // Predicated region
        $region41: #{tpu_custom_call.1} parent=39 // pred_check
          %p246 = pneg %p38
        $region42: #{tpu_custom_call.1} parent=39 // pred_check_branch
          %248 = sbr.rel (%p246) target = $region44
        $region43: #{tpu_custom_call.1} parent=39 // pred_region
          %249 = dma.done [#allocation4], 128
        $region44: #{tpu_custom_call.1} parent=39 // pred_fallthru
          _
        %s250 = sand.u32 %s22, 1
        %s251 = scalar_lea.sflag [#allocation7], %s250
        %s252 = sand.u32 %s51, 1
        %s253 = smul.addr %s252, 192
        %s254 = scalar_lea.vmem [#allocation6], %s253
        // Predicated region
        $region45: #{tpu_custom_call.1} parent=39 // pred_check
          %p255 = pneg %p64
        $region46: #{tpu_custom_call.1} parent=39 // pred_check_branch
          %257 = sbr.rel (%p255) target = $region48
        $region47: #{tpu_custom_call.1} parent=39 // pred_region
          %258 = dma.done %s251, 3072
        $region48: #{tpu_custom_call.1} parent=39 // pred_fallthru
          _
        %s259 = sand.u32 %s22, 1
        %s260 = scalar_lea.sflag [#allocation7], %s259
        %s261 = sand.u32 %s77, 1
        %s262 = smul.addr %s261, 3
        %s263 = scalar_lea.vmem [#allocation8], %s262
        // Predicated region
        $region49: #{tpu_custom_call.1} parent=39 // pred_check
          %p264 = pneg %p90
        $region50: #{tpu_custom_call.1} parent=39 // pred_check_branch
          %266 = sbr.rel (%p264) target = $region52
        $region51: #{tpu_custom_call.1} parent=39 // pred_region
          %267 = dma.done %s260, 48
        $region52: #{tpu_custom_call.1} parent=39 // pred_fallthru
          _
        // Predicated region
        $region53: #{tpu_custom_call.1} parent=39 // pred_check
          %p268 = pneg %p111
        $region54: #{tpu_custom_call.1} parent=39 // pred_check_branch
          %270 = sbr.rel (%p268) target = $region56
        $region55: #{tpu_custom_call.1} parent=39 // pred_region
          %271 = dma.done [#allocation10], 1024
        $region56: #{tpu_custom_call.1} parent=39 // pred_fallthru
          _
        %p272 = pneg %p38
        %p273 = pneg %p35
        %s274 = sand.u32 %s22, 1
        %s275 = scalar_lea.sflag [#allocation7], %s274
        %s276 = sand.u32 %s51, 1
        %s277 = smul.addr %s276, 192
        %s278 = scalar_lea.vmem [#allocation6], %s277
        %p279 = pneg %p64
        %p280 = pneg %p61
        %s281 = sand.u32 %s22, 1
        %s282 = scalar_lea.sflag [#allocation7], %s281
        %s283 = sand.u32 %s77, 1
        %s284 = smul.addr %s283, 3
        %s285 = scalar_lea.vmem [#allocation8], %s284
        %p286 = pneg %p90
        %p287 = pneg %p87
        %p288 = pneg %p111
        %p289 = pneg %p108
        %p290 = pneg %p132
        %p291 = pneg %p129
        %p292 = pneg %p153
        %p293 = pneg %p150
        %p295 = scmp.eq.s32.totalorder %s22, 0
        // Predicated region
        $region57: #{tpu_custom_call.1} parent=39 // pred_check
          %p296 = pneg %p295
        $region58: #{tpu_custom_call.1} parent=39 // pred_check_branch
          %298 = sbr.rel (%p296) target = $region60
        $region59: #{tpu_custom_call.1} parent=39 // pred_region
          %v299 = vld [vmem:[#allocation3] sm:$0xff]
          %300 = vst [vmem:[#allocation2] sm:$0xff] %v299
        $region60: #{tpu_custom_call.1} parent=39 // pred_fallthru
          _
        %v301 = vld [vmem:[#allocation2] sm:$0xff]
        %v302 = vpack.c.bf16 %v301, %v301
        %v303 = vld [vmem:[%s254] sm:$0xff]
        %v304 = vld [vmem:[%s254 + $0x8] sm:$0xf]
        %v305 = vld [vmem:[%s254 + $0xc] sm:$0xff]
        %v306 = vld [vmem:[%s254 + $0x14] sm:$0xf]
        %v307 = vld [vmem:[%s254 + $0x18] sm:$0xff]
        %v308 = vld [vmem:[%s254 + $0x20] sm:$0xf]
        %v309 = vld [vmem:[%s254 + $0x24] sm:$0xff]
        %v310 = vld [vmem:[%s254 + $0x2c] sm:$0xf]
        %v311 = vld [vmem:[%s254 + $0x30] sm:$0xff]
        %v312 = vld [vmem:[%s254 + $0x38] sm:$0xf]
        %v313 = vld [vmem:[%s254 + $0x3c] sm:$0xff]
        %v314 = vld [vmem:[%s254 + $0x44] sm:$0xf]
        %v315 = vld [vmem:[%s254 + $0x48] sm:$0xff]
        %v316 = vld [vmem:[%s254 + $0x50] sm:$0xf]
        %v317 = vld [vmem:[%s254 + $0x54] sm:$0xff]
        %v318 = vld [vmem:[%s254 + $0x5c] sm:$0xf]
        %v319 = vld [vmem:[%s254 + $0x60] sm:$0xff]
        %v320 = vld [vmem:[%s254 + $0x68] sm:$0xf]
        %v321 = vld [vmem:[%s254 + $0x6c] sm:$0xff]
        %v322 = vld [vmem:[%s254 + $0x74] sm:$0xf]
        %v323 = vld [vmem:[%s254 + $0x78] sm:$0xff]
        %v324 = vld [vmem:[%s254 + $0x80] sm:$0xf]
        %v325 = vld [vmem:[%s254 + $0x84] sm:$0xff]
        %v326 = vld [vmem:[%s254 + $0x8c] sm:$0xf]
        %v327 = vld [vmem:[%s254 + $0x90] sm:$0xff]
        %v328 = vld [vmem:[%s254 + $0x98] sm:$0xf]
        %v329 = vld [vmem:[%s254 + $0x9c] sm:$0xff]
        %v330 = vld [vmem:[%s254 + $0xa4] sm:$0xf]
        %v331 = vld [vmem:[%s254 + $0xa8] sm:$0xff]
        %v332 = vld [vmem:[%s254 + $0xb0] sm:$0xf]
        %v333 = vld [vmem:[%s254 + $0xb4] sm:$0xff]
        %v334 = vld [vmem:[%s254 + $0xbc] sm:$0xf]
        %v335 = vld [vmem:[%s263] sm:$0x7]
        %v337 = vlaneseq
        %v338 = vshrl.u32 %v337, 7
        %v339 = vsub.s32 0, %v338
        %v340 = vrot.slane %v335, %v339
        %v341 = vlaneseq
        %v342 = vshrl.u32 %v341, 7
        %v343 = vsub.s32 1, %v342
        %v344 = vrot.slane %v335, %v343
        %v345 = vlaneseq
        %v346 = vshrl.u32 %v345, 7
        %v347 = vsub.s32 2, %v346
        %v348 = vrot.slane %v335, %v347
        %v384 = vunpack.c.l.b16 %v303
        %v385 = vunpack.c.h.b16 %v303
        %v386 = vunpack.c.l.b16 %v304
        %v387 = vunpack.c.l.b16 %v305
        %v388 = vunpack.c.h.b16 %v305
        %v389 = vunpack.c.l.b16 %v306
        %v390 = vunpack.c.l.b16 %v307
        %v391 = vunpack.c.h.b16 %v307
        %v392 = vunpack.c.l.b16 %v308
        %v393 = vunpack.c.l.b16 %v309
        %v394 = vunpack.c.h.b16 %v309
        %v395 = vunpack.c.l.b16 %v310
        %v396 = vunpack.c.l.b16 %v311
        %v397 = vunpack.c.h.b16 %v311
        %v398 = vunpack.c.l.b16 %v312
        %v399 = vunpack.c.l.b16 %v313
        %v400 = vunpack.c.h.b16 %v313
        %v401 = vunpack.c.l.b16 %v314
        %v402 = vunpack.c.l.b16 %v315
        %v403 = vunpack.c.h.b16 %v315
        %v404 = vunpack.c.l.b16 %v316
        %v405 = vunpack.c.l.b16 %v317
        %v406 = vunpack.c.h.b16 %v317
        %v407 = vunpack.c.l.b16 %v318
        %v408 = vunpack.c.l.b16 %v319
        %v409 = vunpack.c.h.b16 %v319
        %v410 = vunpack.c.l.b16 %v320
        %v411 = vunpack.c.l.b16 %v321
        %v412 = vunpack.c.h.b16 %v321
        %v413 = vunpack.c.l.b16 %v322
        %v414 = vunpack.c.l.b16 %v323
        %v415 = vunpack.c.h.b16 %v323
        %v416 = vunpack.c.l.b16 %v324
        %v417 = vunpack.c.l.b16 %v325
        %v418 = vunpack.c.h.b16 %v325
        %v419 = vunpack.c.l.b16 %v326
        %v420 = vunpack.c.l.b16 %v327
        %v421 = vunpack.c.h.b16 %v327
        %v422 = vunpack.c.l.b16 %v328
        %v423 = vunpack.c.l.b16 %v329
        %v424 = vunpack.c.h.b16 %v329
        %v425 = vunpack.c.l.b16 %v330
        %v426 = vunpack.c.l.b16 %v331
        %v427 = vunpack.c.h.b16 %v331
        %v428 = vunpack.c.l.b16 %v332
        %v429 = vunpack.c.l.b16 %v333
        %v430 = vunpack.c.h.b16 %v333
        %v431 = vunpack.c.l.b16 %v334
        %v432 = vpack.c.b16 %v387, %v384
        %v433 = vpack.c.b16 %v388, %v385
        %v434 = vpack.c.b16 %v389, %v386
        %v435 = vpack.c.b16 %v393, %v390
        %v436 = vpack.c.b16 %v394, %v391
        %v437 = vpack.c.b16 %v395, %v392
        %v438 = vpack.c.b16 %v399, %v396
        %v439 = vpack.c.b16 %v400, %v397
        %v440 = vpack.c.b16 %v401, %v398
        %v441 = vpack.c.b16 %v405, %v402
        %v442 = vpack.c.b16 %v406, %v403
        %v443 = vpack.c.b16 %v407, %v404
        %v444 = vpack.c.b16 %v411, %v408
        %v445 = vpack.c.b16 %v412, %v409
        %v446 = vpack.c.b16 %v413, %v410
        %v447 = vpack.c.b16 %v417, %v414
        %v448 = vpack.c.b16 %v418, %v415
        %v449 = vpack.c.b16 %v419, %v416
        %v450 = vpack.c.b16 %v423, %v420
        %v451 = vpack.c.b16 %v424, %v421
        %v452 = vpack.c.b16 %v425, %v422
        %v453 = vpack.c.b16 %v429, %v426
        %v454 = vpack.c.b16 %v430, %v427
        %v455 = vpack.c.b16 %v431, %v428
        %480 = vmatprep.subr.bf16.mxu0 %v454
        %481 = vmatpush1.bf16.msra.mxu0 %v453
        %482 = vmatprep.subr.bf16.mxu0 %v451
        %483 = vmatpush1.bf16.msra.mxu0 %v450
        %484 = vmatprep.subr.bf16.mxu0 %v448
        %485 = vmatpush1.bf16.msra.mxu0 %v447
        %486 = vmatprep.subr.bf16.mxu0 %v445
        %487 = vmatpush1.bf16.msra.mxu0 %v444
        %488 = vmatprep.subr.bf16.mxu0 %v442
        %489 = vmatpush1.bf16.msra.mxu0 %v441
        %490 = vmatprep.subr.bf16.mxu0 %v439
        %491 = vmatpush1.bf16.msra.mxu0 %v438
        %492 = vmatprep.subr.bf16.mxu0 %v436
        %493 = vmatpush1.bf16.msra.mxu0 %v435
        %494 = vmatprep.subr.bf16.mxu0 %v433
        %495 = vmatpush1.bf16.msra.mxu0 %v432
        %496 = vmatprep.subr.bf16.mxu0 0
        %497 = vmatpush2.bf16.msra.mxu0 0
        %498 = vmatprep.subr.bf16.mxu0 0
        %499 = vmatpush2.bf16.msra.mxu0 0
        %500 = vmatprep.subr.bf16.mxu0 0
        %501 = vmatpush2.bf16.msra.mxu0 0
        %502 = vmatprep.subr.bf16.mxu0 0
        %503 = vmatpush2.bf16.msra.mxu0 0
        %504 = vmatprep.subr.bf16.mxu0 0
        %505 = vmatpush2.bf16.msra.mxu0 0
        %506 = vmatprep.subr.bf16.mxu0 0
        %507 = vmatpush2.bf16.msra.mxu0 0
        %508 = vmatprep.subr.bf16.mxu0 0
        %509 = vmatpush2.bf16.msra.mxu0 0
        %510 = vmatprep.subr.bf16.mxu0 0
        %511 = vmatpush2.bf16.msra.mxu0 0
        %512 = vmatprep.mubr.bf16.mxu0 0
        %513 = vmatmul.mubr.bf16.gmra.mxu0 %v302
        %v514 = vpop.f32.mrf.mxu0
        %v515 = vadd.f32 %v340, %v514
        %v516 = vpop.f32.mrf.mxu0
        %v517 = vadd.f32 %v344, %v516
        %v518 = vpop.f32.mrf.mxu0
        %v519 = vpop.f32.mrf.mxu0
        %520 = vdwg.mxu0
        %521 = vmatprep.subr.bf16.mxu0 0
        %522 = vmatpush1.bf16.msra.mxu0 %v455
        %523 = vmatprep.subr.bf16.mxu0 0
        %524 = vmatpush1.bf16.msra.mxu0 %v452
        %525 = vmatprep.subr.bf16.mxu0 0
        %526 = vmatpush1.bf16.msra.mxu0 %v449
        %527 = vmatprep.subr.bf16.mxu0 0
        %528 = vmatpush1.bf16.msra.mxu0 %v446
        %529 = vmatprep.subr.bf16.mxu0 0
        %530 = vmatpush1.bf16.msra.mxu0 %v443
        %531 = vmatprep.subr.bf16.mxu0 0
        %532 = vmatpush1.bf16.msra.mxu0 %v440
        %533 = vmatprep.subr.bf16.mxu0 0
        %534 = vmatpush1.bf16.msra.mxu0 %v437
        %535 = vmatprep.subr.bf16.mxu0 0
        %536 = vmatpush1.bf16.msra.mxu0 %v434
        %537 = vmatprep.subr.bf16.mxu0 0
        %538 = vmatpush2.bf16.msra.mxu0 0
        %539 = vmatprep.subr.bf16.mxu0 0
        %540 = vmatpush2.bf16.msra.mxu0 0
        %541 = vmatprep.subr.bf16.mxu0 0
        %542 = vmatpush2.bf16.msra.mxu0 0
        %543 = vmatprep.subr.bf16.mxu0 0
        %544 = vmatpush2.bf16.msra.mxu0 0
        %545 = vmatprep.subr.bf16.mxu0 0
        %546 = vmatpush2.bf16.msra.mxu0 0
        %547 = vmatprep.subr.bf16.mxu0 0
        %548 = vmatpush2.bf16.msra.mxu0 0
        %549 = vmatprep.subr.bf16.mxu0 0
        %550 = vmatpush2.bf16.msra.mxu0 0
        %551 = vmatprep.subr.bf16.mxu0 0
        %552 = vmatpush2.bf16.msra.mxu0 0
        %553 = vmatprep.mubr.bf16.mxu0 0
        %554 = vmatmul.mubr.bf16.gmra.mxu0 %v302
        %v555 = vpop.f32.mrf.mxu0
        %v556 = vadd.f32 %v348, %v555
        %v557 = vpop.f32.mrf.mxu0
        %v558 = vpop.f32.mrf.mxu0
        %v559 = vpop.f32.mrf.mxu0
        %560 = vdwg.mxu0
        %v561 = vxor.u32 %v515, 2147483648
        %v562 = vxor.u32 %v517, 2147483648
        %v563 = vmul.f32 %v561, 1.442695
        %v564 = vpow.pop %v563
        %v565 = vmul.f32 %v562, 1.442695
        %v566 = vpow.pop %v565
        %v567 = vadd.f32 %v564, 1.0
        %v568 = vadd.f32 %v566, 1.0
        %v569 = vrcp.pop %v567
        %v570 = vmul.f32 1.0, %v569
        %v571 = vrcp.pop %v568
        %v572 = vmul.f32 1.0, %v571
        %v573 = vtanh.pop %v556
        %v574 = vmul.f32 %v570, %v573
        %v575 = vtanh.pop %v574
        %v576 = vmul.f32 %v572, %v575
        %577 = vst [vmem:[#allocation2] sm:$0xff] %v576
        %p578 = scmp.eq.s32.totalorder %s22, 1
        // Predicated region
        $region61: #{tpu_custom_call.1} parent=39 // pred_check
          %p579 = pneg %p578
        $region62: #{tpu_custom_call.1} parent=39 // pred_check_branch
          %581 = sbr.rel (%p579) target = $region64
        $region63: #{tpu_custom_call.1} parent=39 // pred_region
          %v582 = vpack.c.bf16 %v576, %v576
          %v583 = vld [vmem:[#allocation9] sm:$0xf]
          %v584 = vld [vmem:[#allocation9 + $0x4] sm:$0xf]
          %v585 = vld [vmem:[#allocation9 + $0x8] sm:$0xf]
          %v586 = vld [vmem:[#allocation9 + $0xc] sm:$0xf]
          %v587 = vld [vmem:[#allocation9 + $0x10] sm:$0xf]
          %v588 = vld [vmem:[#allocation9 + $0x14] sm:$0xf]
          %v589 = vld [vmem:[#allocation9 + $0x18] sm:$0xf]
          %v590 = vld [vmem:[#allocation9 + $0x1c] sm:$0xf]
          %v591 = vld [vmem:[#allocation9 + $0x20] sm:$0xf]
          %v592 = vld [vmem:[#allocation9 + $0x24] sm:$0xf]
          %v593 = vld [vmem:[#allocation9 + $0x28] sm:$0xf]
          %v594 = vld [vmem:[#allocation9 + $0x2c] sm:$0xf]
          %v595 = vld [vmem:[#allocation9 + $0x30] sm:$0xf]
          %v596 = vld [vmem:[#allocation9 + $0x34] sm:$0xf]
          %v597 = vld [vmem:[#allocation9 + $0x38] sm:$0xf]
          %v598 = vld [vmem:[#allocation9 + $0x3c] sm:$0xf]
          %v599 = vld [vmem:[%s4] sm:$0x1]
          %v601 = vlaneseq
          %v602 = vshrl.u32 %v601, 7
          %v603 = vsub.s32 0, %v602
          %v604 = vrot.slane %v599, %v603
          %v622 = vunpack.c.l.b16 %v583
          %v623 = vunpack.c.l.b16 %v584
          %v624 = vunpack.c.l.b16 %v585
          %v625 = vunpack.c.l.b16 %v586
          %v626 = vunpack.c.l.b16 %v587
          %v627 = vunpack.c.l.b16 %v588
          %v628 = vunpack.c.l.b16 %v589
          %v629 = vunpack.c.l.b16 %v590
          %v630 = vunpack.c.l.b16 %v591
          %v631 = vunpack.c.l.b16 %v592
          %v632 = vunpack.c.l.b16 %v593
          %v633 = vunpack.c.l.b16 %v594
          %v634 = vunpack.c.l.b16 %v595
          %v635 = vunpack.c.l.b16 %v596
          %v636 = vunpack.c.l.b16 %v597
          %v637 = vunpack.c.l.b16 %v598
          %v638 = vpack.c.b16 %v623, %v622
          %v639 = vpack.c.b16 %v625, %v624
          %v640 = vpack.c.b16 %v627, %v626
          %v641 = vpack.c.b16 %v629, %v628
          %v642 = vpack.c.b16 %v631, %v630
          %v643 = vpack.c.b16 %v633, %v632
          %v644 = vpack.c.b16 %v635, %v634
          %v645 = vpack.c.b16 %v637, %v636
          %654 = vmatprep.subr.bf16.mxu0 0
          %655 = vmatpush1.bf16.msra.mxu0 %v645
          %656 = vmatprep.subr.bf16.mxu0 0
          %657 = vmatpush1.bf16.msra.mxu0 %v644
          %658 = vmatprep.subr.bf16.mxu0 0
          %659 = vmatpush1.bf16.msra.mxu0 %v643
          %660 = vmatprep.subr.bf16.mxu0 0
          %661 = vmatpush1.bf16.msra.mxu0 %v642
          %662 = vmatprep.subr.bf16.mxu0 0
          %663 = vmatpush1.bf16.msra.mxu0 %v641
          %664 = vmatprep.subr.bf16.mxu0 0
          %665 = vmatpush1.bf16.msra.mxu0 %v640
          %666 = vmatprep.subr.bf16.mxu0 0
          %667 = vmatpush1.bf16.msra.mxu0 %v639
          %668 = vmatprep.subr.bf16.mxu0 0
          %669 = vmatpush1.bf16.msra.mxu0 %v638
          %670 = vmatprep.subr.bf16.mxu0 0
          %671 = vmatpush2.bf16.msra.mxu0 0
          %672 = vmatprep.subr.bf16.mxu0 0
          %673 = vmatpush2.bf16.msra.mxu0 0
          %674 = vmatprep.subr.bf16.mxu0 0
          %675 = vmatpush2.bf16.msra.mxu0 0
          %676 = vmatprep.subr.bf16.mxu0 0
          %677 = vmatpush2.bf16.msra.mxu0 0
          %678 = vmatprep.subr.bf16.mxu0 0
          %679 = vmatpush2.bf16.msra.mxu0 0
          %680 = vmatprep.subr.bf16.mxu0 0
          %681 = vmatpush2.bf16.msra.mxu0 0
          %682 = vmatprep.subr.bf16.mxu0 0
          %683 = vmatpush2.bf16.msra.mxu0 0
          %684 = vmatprep.subr.bf16.mxu0 0
          %685 = vmatpush2.bf16.msra.mxu0 0
          %686 = vmatprep.mubr.bf16.mxu0 0
          %687 = vmatmul.mubr.bf16.gmra.mxu0 %v582
          %v688 = vpop.f32.mrf.mxu0
          %v689 = vadd.f32 %v604, %v688
          %v690 = vpop.f32.mrf.mxu0
          %v691 = vpop.f32.mrf.mxu0
          %v692 = vpop.f32.mrf.mxu0
          %693 = vdwg.mxu0
          %v694 = vtanh.pop %v689
          %695 = vst [vmem:[#allocation11] sm:$0xff] %v694
        $region64: #{tpu_custom_call.1} parent=39 // pred_fallthru
          _
        // Predicated region
        $region65: #{tpu_custom_call.1} parent=39 // pred_check
          %p696 = pneg %p150
        $region66: #{tpu_custom_call.1} parent=39 // pred_check_branch
          %698 = sbr.rel (%p696) target = $region68
        $region67: #{tpu_custom_call.1} parent=39 // pred_region
          %s700 = ssub.s32 128, 128
          %701 = vsyncadd [#allocation5], %s700
          %s703 = sshll.u32 [#allocation11], 4
          %s704 = int_to_ptr.vmem [resolvable:$true] %s703
          %706 = dma.vmem_to_hbm [thread:$0]  %s704, 128, %s5, [#allocation5]
        $region68: #{tpu_custom_call.1} parent=39 // pred_fallthru
          _
        // Predicated region
        $region69: #{tpu_custom_call.1} parent=39 // pred_check
          %p707 = pneg %p150
        $region70: #{tpu_custom_call.1} parent=39 // pred_check_branch
          %709 = sbr.rel (%p707) target = $region72
        $region71: #{tpu_custom_call.1} parent=39 // pred_region
          %710 = dma.done [#allocation5], 128
        $region72: #{tpu_custom_call.1} parent=39 // pred_fallthru
          _
      $region40: #{tpu_custom_call.1} parent=5 // pred_fallthru
        _
      %p711 = scmp.le.s32.totalorder 2, %s17
      // Predicated region
      $region73: #{tpu_custom_call.1} parent=5 // pred_check
        %p712 = pneg %p711
      $region74: #{tpu_custom_call.1} parent=5 // pred_check_branch
        %714 = sbr.rel (%p712) target = $region76
      $region75: #{tpu_custom_call.1} parent=5 // pred_region
        %s715 = ssub.s32 %s17, 2
      $region76: #{tpu_custom_call.1} parent=5 // pred_fallthru
        _
    $region6: #{tpu_custom_call.1} parent=1 // loop_footer
      %s21 = sadd.s32 1, %s17
    $region7: #{tpu_custom_call.1} parent=1 // loop_footer_branch
      %16 = sbr.rel target = $region3
    $region8: #{tpu_custom_call.1} parent=1 // loop_exit
      _
    %716 = vsyncpa [#allocation4], 1
    %s717 = scalar_lea.sflag [#allocation4], 1
    %718 = vsyncpa %s717, 1
    %719 = vsyncpa [#allocation7], 1
    %s720 = scalar_lea.sflag [#allocation7], 1
    %721 = vsyncpa %s720, 1
    %722 = vsyncpa [#allocation10], 1
    %723 = vsyncpa [#allocation5], 1
    %s724 = scalar_lea.sflag [#allocation5], 1
    %725 = vsyncpa %s724, 1

</llo_original>
